<compile_context>
chip_gen: v5e
topology: v5e:2x2
jax: 0.10.0
libtpu: 0.0.40
codegen_flags: <defaults>
</compile_context>

<pallas_src>
import jax
import jax.numpy as jnp
from jax.experimental import pallas as pl
from jax.experimental.pallas import tpu as pltpu

LANE = 128


def _round_up(v, m):
    return (v + m - 1) // m * m


# ----------------------------- kernel ---------------------------------------


def _make_autoencoder_kernel(n_enc, n_dec, num_hlayers, activation,
                             enc_out_dims, dec_out_dims):
    """Build a Pallas kernel closure for the full encoder+decoder MLP."""
    if activation == "tanh":
        act = jnp.tanh
    elif activation == "relu":
        act = lambda v: jnp.maximum(v, 0.0)
    else:
        raise ValueError(activation)

    # activation is applied *before* layer i for i in [1, num_hlayers]
    # (ModuleList iteration order; the final Linear has no preceding act).
    enc_mask = [False] + [True] * num_hlayers + [False] * (n_enc - num_hlayers - 1)
    dec_mask = [False] + [True] * num_hlayers + [False] * (n_dec - num_hlayers - 1)

    def kernel(x_ref, b_ref, *refs):
        # refs layout: [enc W0 .. enc W_{n_enc-1}, dec W0 .. dec W_{n_dec-1},
        #               z_out_ref, xhat_out_ref]
        w_refs = refs[: n_enc + n_dec]
        z_ref, xhat_ref = refs[n_enc + n_dec:]

        # ---- encoder ----
        h = x_ref[...]                       # operands fed natively; f32 accumulate
        li = 0
        for i in range(n_enc):
            if enc_mask[i]:
                h = act(h)                   # h is f32 after the first dot
            out_p = enc_out_dims[i]
            h = (jnp.dot(h, w_refs[li][...], preferred_element_type=jnp.float32)
                 + b_ref[li:li + 1, :out_p])
            li += 1
        z_ref[...] = h.astype(z_ref.dtype)

        # ---- decoder (continue from the live f32 h, no z_ref round trip) ----
        for i in range(n_dec):
            if dec_mask[i]:
                h = act(h)
            out_p = dec_out_dims[i]
            h = (jnp.dot(h, w_refs[li][...], preferred_element_type=jnp.float32)
                 + b_ref[li:li + 1, :out_p])
            li += 1
        xhat_ref[...] = h.astype(xhat_ref.dtype)

    return kernel


# ----------------------------- wrapper ---------------------------------------


def autoencoder_forward(x, enc_params, dec_params, *, num_hlayers, activation,
                        batch_tile=512):
    """Run the full autoencoder forward pass in a single batch-tiled Pallas kernel.

    enc_params / dec_params: list of (W, b) with W shaped (in, out), b shaped (1, out).
    Returns (z, x_hat) like the PyTorch module.
    """
    n_enc = len(enc_params)
    n_dec = len(dec_params)
    n_batch, dim_x = x.shape
    dim_z = enc_params[-1][0].shape[1]
    assert dec_params[-1][0].shape[1] == dim_x

    all_params = list(enc_params) + list(dec_params)

    # Lane-dense padded per-layer dims (multiples of 128).
    in_dims_p = [_round_up(w.shape[0], LANE) for w, _ in all_params]
    out_dims_p = [_round_up(w.shape[1], LANE) for w, _ in all_params]
    max_out_p = max(out_dims_p)
    enc_out_dims = out_dims_p[:n_enc]
    dec_out_dims = out_dims_p[n_enc:]
    dim_x_p = in_dims_p[0]
    dim_z_p = out_dims_p[n_enc - 1]

    # Zero-pad weights to (in_p, out_p); pack all biases into one (L, max_out_p).
    w_pad = []
    b_rows = []
    for (w, b), ip, op in zip(all_params, in_dims_p, out_dims_p):
        w_pad.append(jnp.pad(w, ((0, ip - w.shape[0]), (0, op - w.shape[1]))))
        b2 = jnp.reshape(b, (1, -1)).astype(jnp.float32)
        b_rows.append(jnp.pad(b2, ((0, 0), (0, max_out_p - b2.shape[1]))))
    b_all = jnp.concatenate(b_rows, axis=0)

    # Batch tiling: pad rows to a multiple of the tile.
    tb = min(batch_tile, _round_up(n_batch, 8))
    n_pad = _round_up(n_batch, tb)
    x_p = jnp.pad(x, ((0, n_pad - n_batch), (0, dim_x_p - dim_x)))
    grid = (n_pad // tb,)

    kernel = _make_autoencoder_kernel(
        n_enc, n_dec, num_hlayers, activation, enc_out_dims, dec_out_dims)

    # Weights / packed biases stay resident in VMEM across all batch tiles.
    def resident(shape):
        return pl.BlockSpec(shape, lambda i: (0, 0))

    in_specs = [pl.BlockSpec((tb, dim_x_p), lambda i: (i, 0)),
                resident(b_all.shape)]
    in_specs += [resident(w.shape) for w in w_pad]
    out_specs = (pl.BlockSpec((tb, dim_z_p), lambda i: (i, 0)),
                 pl.BlockSpec((tb, dim_x_p), lambda i: (i, 0)))

    # Cost estimate hint for XLA's scheduler.
    itemsize = x.dtype.itemsize
    flops = 2 * n_pad * sum(ip * op for ip, op in zip(in_dims_p, out_dims_p))
    trans = 0
    if activation == "tanh":
        for li in range(n_enc + n_dec):
            local_i = li if li < n_enc else li - n_enc
            if 1 <= local_i <= num_hlayers:
                trans += n_pad * in_dims_p[li]
    bytes_accessed = int(
        x_p.size * itemsize
        + b_all.size * b_all.dtype.itemsize
        + sum(w.size * w.dtype.itemsize for w in w_pad)
        + n_pad * (dim_z_p + dim_x_p) * itemsize)

    # VMEM budget: params + double-buffered x/z/x_hat blocks, with margin,
    # capped so it is valid on v7x's 64 MiB as well as v5e/v6e's 128 MiB.
    param_bytes = (sum(int(w.size) * w.dtype.itemsize for w in w_pad)
                   + int(b_all.size) * b_all.dtype.itemsize)
    block_bytes = tb * (dim_x_p + dim_z_p + dim_x_p) * itemsize
    footprint = param_bytes + 2 * block_bytes
    vmem_limit = int(min(48 << 20, max(32 << 20, 2 * footprint)))

    z_p, xhat_p = pl.pallas_call(
        kernel,
        out_shape=(jax.ShapeDtypeStruct((n_pad, dim_z_p), x.dtype),
                   jax.ShapeDtypeStruct((n_pad, dim_x_p), x.dtype)),
        grid=grid,
        in_specs=in_specs,
        out_specs=out_specs,
        compiler_params=pltpu.CompilerParams(
            dimension_semantics=("parallel",),
            vmem_limit_bytes=vmem_limit),
        cost_estimate=pl.CostEstimate(flops=int(flops),
                                      transcendentals=int(trans),
                                      bytes_accessed=bytes_accessed),
    )(x_p, b_all, *w_pad)

    # Slice padded lanes / rows back off.
    return z_p[:n_batch, :dim_z], xhat_p[:n_batch, :dim_x]


# ----------------------------- reference (pure JAX) ---------------------------


def _reference_forward(x, enc_params, dec_params, *, num_hlayers, activation):
    act = jnp.tanh if activation == "tanh" else (lambda v: jnp.maximum(v, 0.0))

    def mlp(h, params):
        mask = [False] + [True] * num_hlayers + [False] * (len(params) - num_hlayers - 1)
        for i, (w, b) in enumerate(params):
            if mask[i]:
                h = act(h)
            h = h @ w + b
        return h

    z = mlp(x, enc_params)
    x_hat = mlp(z, dec_params)
    return z, x_hat


# ----------------------------- param init ------------------------------------


def _init_linear(key, fan_in, fan_out, dtype=jnp.float32):
    # Mimic PyTorch nn.Linear default init: U(-1/sqrt(fan_in), 1/sqrt(fan_in)).
    kw, kb = jax.random.split(key)
    bound = 1.0 / jnp.sqrt(jnp.asarray(fan_in, dtype))
    w = jax.random.uniform(kw, (fan_in, fan_out), dtype, -bound, bound)
    b = jax.random.uniform(kb, (1, fan_out), dtype, -bound, bound)
    return w, b


def _build_params(key, dim_in, dim_out, size_hl, num_hlayers):
    # Layer sizes: (dim_in -> H), numHL x (H -> H), (H -> dim_out)
    sizes = [(dim_in, size_hl)] + [(size_hl, size_hl)] * num_hlayers + [(size_hl, dim_out)]
    keys = jax.random.split(key, len(sizes))
    return [_init_linear(k, fi, fo) for k, (fi, fo) in zip(keys, sizes)]


# ----------------------------- main -------------------------------------------


if __name__ == "__main__":
    # Small, module-consistent configuration.
    batch = 8          # "input_dim" rows
    dim_x = 4          # observer.dim_x + optionalDim (optionalDim = 0)
    dim_z = 4          # observer.dim_z
    num_hlayers = 2    # params['num_hlayers']
    size_hl = 32       # params['size_hlayers']
    activation = "tanh"

    key = jax.random.PRNGKey(0)
    kx, kenc, kdec = jax.random.split(key, 3)

    x = jax.random.normal(kx, (batch, dim_x), dtype=jnp.float32)
    enc_params = _build_params(kenc, dim_x, dim_z, size_hl, num_hlayers)
    dec_params = _build_params(kdec, dim_z, dim_x, size_hl, num_hlayers)

    z, x_hat = autoencoder_forward(
        x, enc_params, dec_params, num_hlayers=num_hlayers, activation=activation
    )
    jax.block_until_ready((z, x_hat))

    # Correctness check against a pure-JAX reference.
    z_ref, x_hat_ref = _reference_forward(
        x, enc_params, dec_params, num_hlayers=num_hlayers, activation=activation
    )
    assert z.shape == (batch, dim_z) and x_hat.shape == (batch, dim_x)
    assert jnp.allclose(z, z_ref, atol=1e-5, rtol=1e-5), "z mismatch"
    assert jnp.allclose(x_hat, x_hat_ref, atol=1e-5, rtol=1e-5), "x_hat mismatch"

    print("KERNEL_OK")
</pallas_src>

<mosaic_0001>
module attributes {stable_mosaic.version = 11 : i64} {
  func.func @kernel(%arg0: i32, %arg1: memref<8x128xf32, #tpu.memory_space<vmem>>, %arg2: memref<8x128xf32, #tpu.memory_space<vmem>>, %arg3: memref<128x128xf32, #tpu.memory_space<vmem>>, %arg4: memref<128x128xf32, #tpu.memory_space<vmem>>, %arg5: memref<128x128xf32, #tpu.memory_space<vmem>>, %arg6: memref<128x128xf32, #tpu.memory_space<vmem>>, %arg7: memref<128x128xf32, #tpu.memory_space<vmem>>, %arg8: memref<128x128xf32, #tpu.memory_space<vmem>>, %arg9: memref<128x128xf32, #tpu.memory_space<vmem>>, %arg10: memref<128x128xf32, #tpu.memory_space<vmem>>, %arg11: memref<8x128xf32, #tpu.memory_space<vmem>>, %arg12: memref<8x128xf32, #tpu.memory_space<vmem>>) attributes {dimension_semantics = [#tpu.dimension_semantics<parallel>], iteration_bounds = array<i64: 1>, scalar_prefetch = 0 : i64, scratch_operands = 0 : i64, tpu.core_type = #tpu.core_type<tc>, window_params = [{transform_indices = @transform_0, window_bounds = array<i64: 8, 128>}, {pipeline_mode = #tpu.pipeline_mode<synchronous>, transform_indices = @transform_1, window_bounds = array<i64: 8, 128>}, {pipeline_mode = #tpu.pipeline_mode<synchronous>, transform_indices = @transform_2, window_bounds = array<i64: 128, 128>}, {pipeline_mode = #tpu.pipeline_mode<synchronous>, transform_indices = @transform_3, window_bounds = array<i64: 128, 128>}, {pipeline_mode = #tpu.pipeline_mode<synchronous>, transform_indices = @transform_4, window_bounds = array<i64: 128, 128>}, {pipeline_mode = #tpu.pipeline_mode<synchronous>, transform_indices = @transform_5, window_bounds = array<i64: 128, 128>}, {pipeline_mode = #tpu.pipeline_mode<synchronous>, transform_indices = @transform_6, window_bounds = array<i64: 128, 128>}, {pipeline_mode = #tpu.pipeline_mode<synchronous>, transform_indices = @transform_7, window_bounds = array<i64: 128, 128>}, {pipeline_mode = #tpu.pipeline_mode<synchronous>, transform_indices = @transform_8, window_bounds = array<i64: 128, 128>}, {pipeline_mode = #tpu.pipeline_mode<synchronous>, transform_indices = @transform_9, window_bounds = array<i64: 128, 128>}, {transform_indices = @transform_10, window_bounds = array<i64: 8, 128>}, {transform_indices = @transform_11, window_bounds = array<i64: 8, 128>}]} {
    %c0 = arith.constant 0 : index
    %c0_0 = arith.constant 0 : index
    %0 = vector.load %arg1[%c0, %c0_0] : memref<8x128xf32, #tpu.memory_space<vmem>>, vector<8x128xf32>
    %c0_1 = arith.constant 0 : index
    %c0_2 = arith.constant 0 : index
    %1 = vector.load %arg3[%c0_1, %c0_2] : memref<128x128xf32, #tpu.memory_space<vmem>>, vector<128x128xf32>
    %cst = arith.constant dense<0.000000e+00> : vector<8x128xf32>
    %2 = tpu.matmul %0, %1, %cst {dimension_numbers = #tpu.dot_dimension_numbers<[1], [0], [0], [1], [0, 0, 1, 1], [], []>} : vector<8x128xf32>, vector<128x128xf32>, vector<8x128xf32> -> vector<8x128xf32>
    %c0_3 = arith.constant 0 : index
    %c0_4 = arith.constant 0 : index
    %3 = vector.load %arg2[%c0_3, %c0_4] : memref<8x128xf32, #tpu.memory_space<vmem>>, vector<1x128xf32>
    %4 = vector.broadcast %3 : vector<1x128xf32> to vector<8x128xf32>
    %5 = arith.addf %2, %4 : vector<8x128xf32>
    %6 = math.tanh %5 : vector<8x128xf32>
    %c0_5 = arith.constant 0 : index
    %c0_6 = arith.constant 0 : index
    %7 = vector.load %arg4[%c0_5, %c0_6] : memref<128x128xf32, #tpu.memory_space<vmem>>, vector<128x128xf32>
    %cst_7 = arith.constant dense<0.000000e+00> : vector<8x128xf32>
    %8 = tpu.matmul %6, %7, %cst_7 {dimension_numbers = #tpu.dot_dimension_numbers<[1], [0], [0], [1], [0, 0, 1, 1], [], []>} : vector<8x128xf32>, vector<128x128xf32>, vector<8x128xf32> -> vector<8x128xf32>
    %c1 = arith.constant 1 : index
    %c0_8 = arith.constant 0 : index
    %9 = vector.load %arg2[%c1, %c0_8] : memref<8x128xf32, #tpu.memory_space<vmem>>, vector<1x128xf32>
    %10 = vector.broadcast %9 : vector<1x128xf32> to vector<8x128xf32>
    %11 = arith.addf %8, %10 : vector<8x128xf32>
    %12 = math.tanh %11 : vector<8x128xf32>
    %c0_9 = arith.constant 0 : index
    %c0_10 = arith.constant 0 : index
    %13 = vector.load %arg5[%c0_9, %c0_10] : memref<128x128xf32, #tpu.memory_space<vmem>>, vector<128x128xf32>
    %cst_11 = arith.constant dense<0.000000e+00> : vector<8x128xf32>
    %14 = tpu.matmul %12, %13, %cst_11 {dimension_numbers = #tpu.dot_dimension_numbers<[1], [0], [0], [1], [0, 0, 1, 1], [], []>} : vector<8x128xf32>, vector<128x128xf32>, vector<8x128xf32> -> vector<8x128xf32>
    %c2 = arith.constant 2 : index
    %c0_12 = arith.constant 0 : index
    %15 = vector.load %arg2[%c2, %c0_12] : memref<8x128xf32, #tpu.memory_space<vmem>>, vector<1x128xf32>
    %16 = vector.broadcast %15 : vector<1x128xf32> to vector<8x128xf32>
    %17 = arith.addf %14, %16 : vector<8x128xf32>
    %c0_13 = arith.constant 0 : index
    %c0_14 = arith.constant 0 : index
    %18 = vector.load %arg6[%c0_13, %c0_14] : memref<128x128xf32, #tpu.memory_space<vmem>>, vector<128x128xf32>
    %cst_15 = arith.constant dense<0.000000e+00> : vector<8x128xf32>
    %19 = tpu.matmul %17, %18, %cst_15 {dimension_numbers = #tpu.dot_dimension_numbers<[1], [0], [0], [1], [0, 0, 1, 1], [], []>} : vector<8x128xf32>, vector<128x128xf32>, vector<8x128xf32> -> vector<8x128xf32>
    %c3 = arith.constant 3 : index
    %c0_16 = arith.constant 0 : index
    %20 = vector.load %arg2[%c3, %c0_16] : memref<8x128xf32, #tpu.memory_space<vmem>>, vector<1x128xf32>
    %21 = vector.broadcast %20 : vector<1x128xf32> to vector<8x128xf32>
    %22 = arith.addf %19, %21 : vector<8x128xf32>
    %c0_17 = arith.constant 0 : index
    %c0_18 = arith.constant 0 : index
    %23 = vector.load %arg11[%c0_17, %c0_18] : memref<8x128xf32, #tpu.memory_space<vmem>>, vector<8x128xf32>
    tpu.vector_store %arg11[%c0_17, %c0_18], %22 {strides = array<i32>} : memref<8x128xf32, #tpu.memory_space<vmem>>, vector<8x128xf32>,
    %c0_19 = arith.constant 0 : index
    %c0_20 = arith.constant 0 : index
    %24 = vector.load %arg7[%c0_19, %c0_20] : memref<128x128xf32, #tpu.memory_space<vmem>>, vector<128x128xf32>
    %cst_21 = arith.constant dense<0.000000e+00> : vector<8x128xf32>
    %25 = tpu.matmul %22, %24, %cst_21 {dimension_numbers = #tpu.dot_dimension_numbers<[1], [0], [0], [1], [0, 0, 1, 1], [], []>} : vector<8x128xf32>, vector<128x128xf32>, vector<8x128xf32> -> vector<8x128xf32>
    %c4 = arith.constant 4 : index
    %c0_22 = arith.constant 0 : index
    %26 = vector.load %arg2[%c4, %c0_22] : memref<8x128xf32, #tpu.memory_space<vmem>>, vector<1x128xf32>
    %27 = vector.broadcast %26 : vector<1x128xf32> to vector<8x128xf32>
    %28 = arith.addf %25, %27 : vector<8x128xf32>
    %29 = math.tanh %28 : vector<8x128xf32>
    %c0_23 = arith.constant 0 : index
    %c0_24 = arith.constant 0 : index
    %30 = vector.load %arg8[%c0_23, %c0_24] : memref<128x128xf32, #tpu.memory_space<vmem>>, vector<128x128xf32>
    %cst_25 = arith.constant dense<0.000000e+00> : vector<8x128xf32>
    %31 = tpu.matmul %29, %30, %cst_25 {dimension_numbers = #tpu.dot_dimension_numbers<[1], [0], [0], [1], [0, 0, 1, 1], [], []>} : vector<8x128xf32>, vector<128x128xf32>, vector<8x128xf32> -> vector<8x128xf32>
    %c5 = arith.constant 5 : index
    %c0_26 = arith.constant 0 : index
    %32 = vector.load %arg2[%c5, %c0_26] : memref<8x128xf32, #tpu.memory_space<vmem>>, vector<1x128xf32>
    %33 = vector.broadcast %32 : vector<1x128xf32> to vector<8x128xf32>
    %34 = arith.addf %31, %33 : vector<8x128xf32>
    %35 = math.tanh %34 : vector<8x128xf32>
    %c0_27 = arith.constant 0 : index
    %c0_28 = arith.constant 0 : index
    %36 = vector.load %arg9[%c0_27, %c0_28] : memref<128x128xf32, #tpu.memory_space<vmem>>, vector<128x128xf32>
    %cst_29 = arith.constant dense<0.000000e+00> : vector<8x128xf32>
    %37 = tpu.matmul %35, %36, %cst_29 {dimension_numbers = #tpu.dot_dimension_numbers<[1], [0], [0], [1], [0, 0, 1, 1], [], []>} : vector<8x128xf32>, vector<128x128xf32>, vector<8x128xf32> -> vector<8x128xf32>
    %c6 = arith.constant 6 : index
    %c0_30 = arith.constant 0 : index
    %38 = vector.load %arg2[%c6, %c0_30] : memref<8x128xf32, #tpu.memory_space<vmem>>, vector<1x128xf32>
    %39 = vector.broadcast %38 : vector<1x128xf32> to vector<8x128xf32>
    %40 = arith.addf %37, %39 : vector<8x128xf32>
    %c0_31 = arith.constant 0 : index
    %c0_32 = arith.constant 0 : index
    %41 = vector.load %arg10[%c0_31, %c0_32] : memref<128x128xf32, #tpu.memory_space<vmem>>, vector<128x128xf32>
    %cst_33 = arith.constant dense<0.000000e+00> : vector<8x128xf32>
    %42 = tpu.matmul %40, %41, %cst_33 {dimension_numbers = #tpu.dot_dimension_numbers<[1], [0], [0], [1], [0, 0, 1, 1], [], []>} : vector<8x128xf32>, vector<128x128xf32>, vector<8x128xf32> -> vector<8x128xf32>
    %c7 = arith.constant 7 : index
    %c0_34 = arith.constant 0 : index
    %43 = vector.load %arg2[%c7, %c0_34] : memref<8x128xf32, #tpu.memory_space<vmem>>, vector<1x128xf32>
    %44 = vector.broadcast %43 : vector<1x128xf32> to vector<8x128xf32>
    %45 = arith.addf %42, %44 : vector<8x128xf32>
    %c0_35 = arith.constant 0 : index
    %c0_36 = arith.constant 0 : index
    %46 = vector.load %arg12[%c0_35, %c0_36] : memref<8x128xf32, #tpu.memory_space<vmem>>, vector<8x128xf32>
    tpu.vector_store %arg12[%c0_35, %c0_36], %45 {strides = array<i32>} : memref<8x128xf32, #tpu.memory_space<vmem>>, vector<8x128xf32>,
    return
  }
  func.func @transform_0(%arg0: i32) -> (i32, i32) {
    %c0_i32 = arith.constant 0 : i32
    %c0_i32_0 = arith.constant 0 : i32
    return %arg0, %c0_i32 : i32, i32
  }
  func.func @transform_1(%arg0: i32) -> (i32, i32) {
    %c0_i32 = arith.constant 0 : i32
    %c0_i32_0 = arith.constant 0 : i32
    %c0_i32_1 = arith.constant 0 : i32
    return %c0_i32, %c0_i32_0 : i32, i32
  }
  func.func @transform_2(%arg0: i32) -> (i32, i32) {
    %c0_i32 = arith.constant 0 : i32
    %c0_i32_0 = arith.constant 0 : i32
    %c0_i32_1 = arith.constant 0 : i32
    return %c0_i32, %c0_i32_0 : i32, i32
  }
  func.func @transform_3(%arg0: i32) -> (i32, i32) {
    %c0_i32 = arith.constant 0 : i32
    %c0_i32_0 = arith.constant 0 : i32
    %c0_i32_1 = arith.constant 0 : i32
    return %c0_i32, %c0_i32_0 : i32, i32
  }
  func.func @transform_4(%arg0: i32) -> (i32, i32) {
    %c0_i32 = arith.constant 0 : i32
    %c0_i32_0 = arith.constant 0 : i32
    %c0_i32_1 = arith.constant 0 : i32
    return %c0_i32, %c0_i32_0 : i32, i32
  }
  func.func @transform_5(%arg0: i32) -> (i32, i32) {
    %c0_i32 = arith.constant 0 : i32
    %c0_i32_0 = arith.constant 0 : i32
    %c0_i32_1 = arith.constant 0 : i32
    return %c0_i32, %c0_i32_0 : i32, i32
  }
  func.func @transform_6(%arg0: i32) -> (i32, i32) {
    %c0_i32 = arith.constant 0 : i32
    %c0_i32_0 = arith.constant 0 : i32
    %c0_i32_1 = arith.constant 0 : i32
    return %c0_i32, %c0_i32_0 : i32, i32
  }
  func.func @transform_7(%arg0: i32) -> (i32, i32) {
    %c0_i32 = arith.constant 0 : i32
    %c0_i32_0 = arith.constant 0 : i32
    %c0_i32_1 = arith.constant 0 : i32
    return %c0_i32, %c0_i32_0 : i32, i32
  }
  func.func @transform_8(%arg0: i32) -> (i32, i32) {
    %c0_i32 = arith.constant 0 : i32
    %c0_i32_0 = arith.constant 0 : i32
    %c0_i32_1 = arith.constant 0 : i32
    return %c0_i32, %c0_i32_0 : i32, i32
  }
  func.func @transform_9(%arg0: i32) -> (i32, i32) {
    %c0_i32 = arith.constant 0 : i32
    %c0_i32_0 = arith.constant 0 : i32
    %c0_i32_1 = arith.constant 0 : i32
    return %c0_i32, %c0_i32_0 : i32, i32
  }
  func.func @transform_10(%arg0: i32) -> (i32, i32) {
    %c0_i32 = arith.constant 0 : i32
    %c0_i32_0 = arith.constant 0 : i32
    return %arg0, %c0_i32 : i32, i32
  }
  func.func @transform_11(%arg0: i32) -> (i32, i32) {
    %c0_i32 = arith.constant 0 : i32
    %c0_i32_0 = arith.constant 0 : i32
    return %arg0, %c0_i32 : i32, i32
  }
}

</mosaic_0001>

<llo_original>
// kernel: tpu_custom_call.1
$region0: #{tpu_custom_call.1}
  #allocation0 [shape = 'u32[]', space=smem, size = 0x4, offset = 0x4, fixed_abs, tag = 'smem constant byte address 0x4 - core index']
  #allocation1 [shape = 'u32[72,128]{1,0:T(1,128)}', space=vmem, size = 0x9000, scoped, tag = 'internal scratch']
  %s0 = inlined_call_operand.hbm [shape: f32[8,128], index: 0, kind: input, shape index: {}]
  %s1 = inlined_call_operand.hbm [shape: f32[8,128], index: 1, kind: input, shape index: {}]
  %s2 = inlined_call_operand.hbm [shape: f32[128,128], index: 2, kind: input, shape index: {}]
  %s3 = inlined_call_operand.hbm [shape: f32[128,128], index: 3, kind: input, shape index: {}]
  %s4 = inlined_call_operand.hbm [shape: f32[128,128], index: 4, kind: input, shape index: {}]
  %s5 = inlined_call_operand.hbm [shape: f32[128,128], index: 5, kind: input, shape index: {}]
  %s6 = inlined_call_operand.hbm [shape: f32[128,128], index: 6, kind: input, shape index: {}]
  %s7 = inlined_call_operand.hbm [shape: f32[128,128], index: 7, kind: input, shape index: {}]
  %s8 = inlined_call_operand.hbm [shape: f32[128,128], index: 8, kind: input, shape index: {}]
  %s9 = inlined_call_operand.hbm [shape: f32[128,128], index: 9, kind: input, shape index: {}]
  %s10 = inlined_call_operand.hbm [shape: f32[8,128], index: 10, kind: output, shape index: {0}]
  %s11 = inlined_call_operand.hbm [shape: f32[8,128], index: 11, kind: output, shape index: {1}]
  %12 = xla_tuple %s10, %s11
  %s13 = sld [smem:[#allocation0]]
  $region98: #{tpu_custom_call.1} parent=0
    _
  %s15 = ssub.s32 1, %s13
  %s16 = scalar_select 0, %s15, %s13
  $region1: #{tpu_custom_call.1} parent=0
    #allocation2 [shape = 'u8[4096]{0}', space=vmem, size = 0x1000, scoped, tag = 'input window, operand 0, single buffered']
    #allocation3 [shape = 's32[1]{0}', space=sflag, size = 0x4, scoped, tag = 'scoped memory for tpu_custom_call.1']
    #allocation4 [shape = 's32[1]{0}', space=sflag, size = 0x4, scoped, tag = 'scoped memory for tpu_custom_call.1']
    #allocation5 [shape = 'u8[4096]{0}', space=vmem, size = 0x1000, scoped, tag = 'input window, operand 1, single buffered']
    #allocation6 [shape = 's32[1]{0}', space=sflag, size = 0x4, scoped, tag = 'scoped memory for tpu_custom_call.1']
    #allocation7 [shape = 'u8[65536]{0}', space=vmem, size = 0x10000, scoped, tag = 'input window, operand 2, single buffered']
    #allocation8 [shape = 'u8[65536]{0}', space=vmem, size = 0x10000, scoped, tag = 'input window, operand 3, single buffered']
    #allocation9 [shape = 's32[1]{0}', space=sflag, size = 0x4, scoped, tag = 'scoped memory for tpu_custom_call.1']
    #allocation10 [shape = 'u8[65536]{0}', space=vmem, size = 0x10000, scoped, tag = 'input window, operand 4, single buffered']
    #allocation11 [shape = 'u8[65536]{0}', space=vmem, size = 0x10000, scoped, tag = 'input window, operand 5, single buffered']
    #allocation12 [shape = 's32[1]{0}', space=sflag, size = 0x4, scoped, tag = 'scoped memory for tpu_custom_call.1']
    #allocation13 [shape = 'u8[65536]{0}', space=vmem, size = 0x10000, scoped, tag = 'input window, operand 6, single buffered']
    #allocation14 [shape = 'u8[65536]{0}', space=vmem, size = 0x10000, scoped, tag = 'input window, operand 7, single buffered']
    #allocation15 [shape = 's32[1]{0}', space=sflag, size = 0x4, scoped, tag = 'scoped memory for tpu_custom_call.1']
    #allocation16 [shape = 'u8[65536]{0}', space=vmem, size = 0x10000, scoped, tag = 'input window, operand 8, single buffered']
    #allocation17 [shape = 'u8[65536]{0}', space=vmem, size = 0x10000, scoped, tag = 'input window, operand 9, single buffered']
    #allocation18 [shape = 's32[1]{0}', space=sflag, size = 0x4, scoped, tag = 'scoped memory for tpu_custom_call.1']
    #allocation19 [shape = 'u8[4096]{0}', space=vmem, size = 0x1000, scoped, tag = 'output window, operand 0, single buffered']
    #allocation20 [shape = 'u8[4096]{0}', space=vmem, size = 0x1000, scoped, tag = 'output window, operand 1, single buffered']
    #allocation21 [shape = 's32[1]{0}', space=sflag, size = 0x4, scoped, tag = 'scoped memory for tpu_custom_call.1']
    %17 = vsyncpa [#allocation3], 0
    %18 = vsyncpa [#allocation6], 0
    %19 = vsyncpa [#allocation9], 0
    %20 = vsyncpa [#allocation12], 0
    %21 = vsyncpa [#allocation15], 0
    %22 = vsyncpa [#allocation18], 0
    %23 = vsyncpa [#allocation4], 0
    %24 = vsyncpa [#allocation21], 0
    // Predicated region
    $region2: #{tpu_custom_call.1} parent=1 // pred_check
      _
    $region3: #{tpu_custom_call.1} parent=1 // pred_check_branch
      %26 = sbr.rel (0) target = $region5
    $region4: #{tpu_custom_call.1} parent=1 // pred_region
      %28 = vsyncadd [#allocation3], 0
      %s30 = sshll.u32 %s0, 4
      %s31 = int_to_ptr.hbm [resolvable:$true] %s30
      %s32 = sshll.u32 [#allocation2], 4
      %s33 = int_to_ptr.vmem [resolvable:$true] %s32
      %35 = dma.hbm_to_vmem [thread:$0]  %s31, 128, %s33, [#allocation3]
    $region5: #{tpu_custom_call.1} parent=1 // pred_fallthru
      _
    // Predicated region
    $region6: #{tpu_custom_call.1} parent=1 // pred_check
      _
    $region7: #{tpu_custom_call.1} parent=1 // pred_check_branch
      %37 = sbr.rel (0) target = $region9
    $region8: #{tpu_custom_call.1} parent=1 // pred_region
      %39 = vsyncadd [#allocation6], 0
      %s41 = sshll.u32 %s1, 4
      %s42 = int_to_ptr.hbm [resolvable:$true] %s41
      %s43 = sshll.u32 [#allocation5], 4
      %s44 = int_to_ptr.vmem [resolvable:$true] %s43
      %46 = dma.hbm_to_vmem [thread:$0]  %s42, 128, %s44, [#allocation6]
    $region9: #{tpu_custom_call.1} parent=1 // pred_fallthru
      _
    // Predicated region
    $region10: #{tpu_custom_call.1} parent=1 // pred_check
      _
    $region11: #{tpu_custom_call.1} parent=1 // pred_check_branch
      %48 = sbr.rel (0) target = $region13
    $region12: #{tpu_custom_call.1} parent=1 // pred_region
      %50 = vsyncadd [#allocation6], 0
      %s51 = sshll.u32 %s2, 4
      %s52 = int_to_ptr.hbm [resolvable:$true] %s51
      %s53 = sshll.u32 [#allocation7], 4
      %s54 = int_to_ptr.vmem [resolvable:$true] %s53
      %59 = dma.hbm_to_vmem [thread:$0]  %s52, 2048, %s54, [#allocation6], 128, 128, 8
    $region13: #{tpu_custom_call.1} parent=1 // pred_fallthru
      _
    // Predicated region
    $region14: #{tpu_custom_call.1} parent=1 // pred_check
      _
    $region15: #{tpu_custom_call.1} parent=1 // pred_check_branch
      %61 = sbr.rel (0) target = $region17
    $region16: #{tpu_custom_call.1} parent=1 // pred_region
      %63 = vsyncadd [#allocation9], 0
      %s64 = sshll.u32 %s3, 4
      %s65 = int_to_ptr.hbm [resolvable:$true] %s64
      %s66 = sshll.u32 [#allocation8], 4
      %s67 = int_to_ptr.vmem [resolvable:$true] %s66
      %72 = dma.hbm_to_vmem [thread:$0]  %s65, 2048, %s67, [#allocation9], 128, 128, 8
    $region17: #{tpu_custom_call.1} parent=1 // pred_fallthru
      _
    // Predicated region
    $region18: #{tpu_custom_call.1} parent=1 // pred_check
      _
    $region19: #{tpu_custom_call.1} parent=1 // pred_check_branch
      %74 = sbr.rel (0) target = $region21
    $region20: #{tpu_custom_call.1} parent=1 // pred_region
      %76 = vsyncadd [#allocation9], 0
      %s77 = sshll.u32 %s4, 4
      %s78 = int_to_ptr.hbm [resolvable:$true] %s77
      %s79 = sshll.u32 [#allocation10], 4
      %s80 = int_to_ptr.vmem [resolvable:$true] %s79
      %85 = dma.hbm_to_vmem [thread:$0]  %s78, 2048, %s80, [#allocation9], 128, 128, 8
    $region21: #{tpu_custom_call.1} parent=1 // pred_fallthru
      _
    // Predicated region
    $region22: #{tpu_custom_call.1} parent=1 // pred_check
      _
    $region23: #{tpu_custom_call.1} parent=1 // pred_check_branch
      %87 = sbr.rel (0) target = $region25
    $region24: #{tpu_custom_call.1} parent=1 // pred_region
      %89 = vsyncadd [#allocation12], 0
      %s90 = sshll.u32 %s5, 4
      %s91 = int_to_ptr.hbm [resolvable:$true] %s90
      %s92 = sshll.u32 [#allocation11], 4
      %s93 = int_to_ptr.vmem [resolvable:$true] %s92
      %98 = dma.hbm_to_vmem [thread:$0]  %s91, 2048, %s93, [#allocation12], 128, 128, 8
    $region25: #{tpu_custom_call.1} parent=1 // pred_fallthru
      _
    // Predicated region
    $region26: #{tpu_custom_call.1} parent=1 // pred_check
      _
    $region27: #{tpu_custom_call.1} parent=1 // pred_check_branch
      %100 = sbr.rel (0) target = $region29
    $region28: #{tpu_custom_call.1} parent=1 // pred_region
      %102 = vsyncadd [#allocation12], 0
      %s103 = sshll.u32 %s6, 4
      %s104 = int_to_ptr.hbm [resolvable:$true] %s103
      %s105 = sshll.u32 [#allocation13], 4
      %s106 = int_to_ptr.vmem [resolvable:$true] %s105
      %111 = dma.hbm_to_vmem [thread:$0]  %s104, 2048, %s106, [#allocation12], 128, 128, 8
    $region29: #{tpu_custom_call.1} parent=1 // pred_fallthru
      _
    // Predicated region
    $region30: #{tpu_custom_call.1} parent=1 // pred_check
      _
    $region31: #{tpu_custom_call.1} parent=1 // pred_check_branch
      %113 = sbr.rel (0) target = $region33
    $region32: #{tpu_custom_call.1} parent=1 // pred_region
      %115 = vsyncadd [#allocation15], 0
      %s116 = sshll.u32 %s7, 4
      %s117 = int_to_ptr.hbm [resolvable:$true] %s116
      %s118 = sshll.u32 [#allocation14], 4
      %s119 = int_to_ptr.vmem [resolvable:$true] %s118
      %124 = dma.hbm_to_vmem [thread:$0]  %s117, 2048, %s119, [#allocation15], 128, 128, 8
    $region33: #{tpu_custom_call.1} parent=1 // pred_fallthru
      _
    // Predicated region
    $region34: #{tpu_custom_call.1} parent=1 // pred_check
      _
    $region35: #{tpu_custom_call.1} parent=1 // pred_check_branch
      %126 = sbr.rel (0) target = $region37
    $region36: #{tpu_custom_call.1} parent=1 // pred_region
      %128 = vsyncadd [#allocation15], 0
      %s129 = sshll.u32 %s8, 4
      %s130 = int_to_ptr.hbm [resolvable:$true] %s129
      %s131 = sshll.u32 [#allocation16], 4
      %s132 = int_to_ptr.vmem [resolvable:$true] %s131
      %137 = dma.hbm_to_vmem [thread:$0]  %s130, 2048, %s132, [#allocation15], 128, 128, 8
    $region37: #{tpu_custom_call.1} parent=1 // pred_fallthru
      _
    // Predicated region
    $region38: #{tpu_custom_call.1} parent=1 // pred_check
      _
    $region39: #{tpu_custom_call.1} parent=1 // pred_check_branch
      %139 = sbr.rel (0) target = $region41
    $region40: #{tpu_custom_call.1} parent=1 // pred_region
      %141 = vsyncadd [#allocation18], 0
      %s142 = sshll.u32 %s9, 4
      %s143 = int_to_ptr.hbm [resolvable:$true] %s142
      %s144 = sshll.u32 [#allocation17], 4
      %s145 = int_to_ptr.vmem [resolvable:$true] %s144
      %150 = dma.hbm_to_vmem [thread:$0]  %s143, 2048, %s145, [#allocation18], 128, 128, 8
    $region41: #{tpu_custom_call.1} parent=1 // pred_fallthru
      _
    // Predicated region
    $region42: #{tpu_custom_call.1} parent=1 // pred_check
      _
    $region43: #{tpu_custom_call.1} parent=1 // pred_check_branch
      %152 = sbr.rel (0) target = $region45
    $region44: #{tpu_custom_call.1} parent=1 // pred_region
      %154 = dma.done [#allocation3], 128
    $region45: #{tpu_custom_call.1} parent=1 // pred_fallthru
      _
    // Predicated region
    $region46: #{tpu_custom_call.1} parent=1 // pred_check
      _
    $region47: #{tpu_custom_call.1} parent=1 // pred_check_branch
      %156 = sbr.rel (0) target = $region49
    $region48: #{tpu_custom_call.1} parent=1 // pred_region
      %158 = dma.done [#allocation6], 128
    $region49: #{tpu_custom_call.1} parent=1 // pred_fallthru
      _
    // Predicated region
    $region50: #{tpu_custom_call.1} parent=1 // pred_check
      _
    $region51: #{tpu_custom_call.1} parent=1 // pred_check_branch
      %160 = sbr.rel (0) target = $region53
    $region52: #{tpu_custom_call.1} parent=1 // pred_region
      %162 = dma.done [#allocation6], 2048
    $region53: #{tpu_custom_call.1} parent=1 // pred_fallthru
      _
    // Predicated region
    $region54: #{tpu_custom_call.1} parent=1 // pred_check
      _
    $region55: #{tpu_custom_call.1} parent=1 // pred_check_branch
      %164 = sbr.rel (0) target = $region57
    $region56: #{tpu_custom_call.1} parent=1 // pred_region
      %166 = dma.done [#allocation9], 2048
    $region57: #{tpu_custom_call.1} parent=1 // pred_fallthru
      _
    // Predicated region
    $region58: #{tpu_custom_call.1} parent=1 // pred_check
      _
    $region59: #{tpu_custom_call.1} parent=1 // pred_check_branch
      %168 = sbr.rel (0) target = $region61
    $region60: #{tpu_custom_call.1} parent=1 // pred_region
      %170 = dma.done [#allocation9], 2048
    $region61: #{tpu_custom_call.1} parent=1 // pred_fallthru
      _
    // Predicated region
    $region62: #{tpu_custom_call.1} parent=1 // pred_check
      _
    $region63: #{tpu_custom_call.1} parent=1 // pred_check_branch
      %172 = sbr.rel (0) target = $region65
    $region64: #{tpu_custom_call.1} parent=1 // pred_region
      %174 = dma.done [#allocation12], 2048
    $region65: #{tpu_custom_call.1} parent=1 // pred_fallthru
      _
    // Predicated region
    $region66: #{tpu_custom_call.1} parent=1 // pred_check
      _
    $region67: #{tpu_custom_call.1} parent=1 // pred_check_branch
      %176 = sbr.rel (0) target = $region69
    $region68: #{tpu_custom_call.1} parent=1 // pred_region
      %178 = dma.done [#allocation12], 2048
    $region69: #{tpu_custom_call.1} parent=1 // pred_fallthru
      _
    // Predicated region
    $region70: #{tpu_custom_call.1} parent=1 // pred_check
      _
    $region71: #{tpu_custom_call.1} parent=1 // pred_check_branch
      %180 = sbr.rel (0) target = $region73
    $region72: #{tpu_custom_call.1} parent=1 // pred_region
      %182 = dma.done [#allocation15], 2048
    $region73: #{tpu_custom_call.1} parent=1 // pred_fallthru
      _
    // Predicated region
    $region74: #{tpu_custom_call.1} parent=1 // pred_check
      _
    $region75: #{tpu_custom_call.1} parent=1 // pred_check_branch
      %184 = sbr.rel (0) target = $region77
    $region76: #{tpu_custom_call.1} parent=1 // pred_region
      %186 = dma.done [#allocation15], 2048
    $region77: #{tpu_custom_call.1} parent=1 // pred_fallthru
      _
    // Predicated region
    $region78: #{tpu_custom_call.1} parent=1 // pred_check
      _
    $region79: #{tpu_custom_call.1} parent=1 // pred_check_branch
      %188 = sbr.rel (0) target = $region81
    $region80: #{tpu_custom_call.1} parent=1 // pred_region
      %190 = dma.done [#allocation18], 2048
    $region81: #{tpu_custom_call.1} parent=1 // pred_fallthru
      _
    %v191 = vld [vmem:[#allocation2] sm:$0xff]
    %v192 = vld [vmem:[#allocation7] sm:$0xff]
    %v193 = vld [vmem:[#allocation7 + $0x8] sm:$0xff]
    %v194 = vld [vmem:[#allocation7 + $0x10] sm:$0xff]
    %v195 = vld [vmem:[#allocation7 + $0x18] sm:$0xff]
    %v196 = vld [vmem:[#allocation7 + $0x20] sm:$0xff]
    %v197 = vld [vmem:[#allocation7 + $0x28] sm:$0xff]
    %v198 = vld [vmem:[#allocation7 + $0x30] sm:$0xff]
    %v199 = vld [vmem:[#allocation7 + $0x38] sm:$0xff]
    %v200 = vld [vmem:[#allocation7 + $0x40] sm:$0xff]
    %v201 = vld [vmem:[#allocation7 + $0x48] sm:$0xff]
    %v202 = vld [vmem:[#allocation7 + $0x50] sm:$0xff]
    %v203 = vld [vmem:[#allocation7 + $0x58] sm:$0xff]
    %v204 = vld [vmem:[#allocation7 + $0x60] sm:$0xff]
    %v205 = vld [vmem:[#allocation7 + $0x68] sm:$0xff]
    %v206 = vld [vmem:[#allocation7 + $0x70] sm:$0xff]
    %v207 = vld [vmem:[#allocation7 + $0x78] sm:$0xff]
    %v208 = vld [vmem:[#allocation5] sm:$0x1]
    %v209 = vperm.slane %v208, 0
    %210 = vmatpush.msra.mxu0 %v207
    %211 = vmatpush.msra.mxu0 %v206
    %212 = vmatpush.msra.mxu0 %v205
    %213 = vmatpush.msra.mxu0 %v204
    %214 = vmatpush.msra.mxu0 %v203
    %215 = vmatpush.msra.mxu0 %v202
    %216 = vmatpush.msra.mxu0 %v201
    %217 = vmatpush.msra.mxu0 %v200
    %218 = vmatpush.msra.mxu0 %v199
    %219 = vmatpush.msra.mxu0 %v198
    %220 = vmatpush.msra.mxu0 %v197
    %221 = vmatpush.msra.mxu0 %v196
    %222 = vmatpush.msra.mxu0 %v195
    %223 = vmatpush.msra.mxu0 %v194
    %224 = vmatpush.msra.mxu0 %v193
    %225 = vmatpush.msra.mxu0 %v192
    %226 = vmatmul.f32.gmra.mxu0 %v191
    %v227 = vpop.f32.mrf.mxu0
    %v228 = vadd.f32 %v209, %v227
    %229 = vdwg.mxu0
    %v230 = vtanh.pop %v228
    %v231 = vld [vmem:[#allocation8] sm:$0xff]
    %v232 = vld [vmem:[#allocation8 + $0x8] sm:$0xff]
    %v233 = vld [vmem:[#allocation8 + $0x10] sm:$0xff]
    %v234 = vld [vmem:[#allocation8 + $0x18] sm:$0xff]
    %v235 = vld [vmem:[#allocation8 + $0x20] sm:$0xff]
    %v236 = vld [vmem:[#allocation8 + $0x28] sm:$0xff]
    %v237 = vld [vmem:[#allocation8 + $0x30] sm:$0xff]
    %v238 = vld [vmem:[#allocation8 + $0x38] sm:$0xff]
    %v239 = vld [vmem:[#allocation8 + $0x40] sm:$0xff]
    %v240 = vld [vmem:[#allocation8 + $0x48] sm:$0xff]
    %v241 = vld [vmem:[#allocation8 + $0x50] sm:$0xff]
    %v242 = vld [vmem:[#allocation8 + $0x58] sm:$0xff]
    %v243 = vld [vmem:[#allocation8 + $0x60] sm:$0xff]
    %v244 = vld [vmem:[#allocation8 + $0x68] sm:$0xff]
    %v245 = vld [vmem:[#allocation8 + $0x70] sm:$0xff]
    %v246 = vld [vmem:[#allocation8 + $0x78] sm:$0xff]
    %v247 = vld [vmem:[#allocation5 + $0x1] sm:$0x1]
    %v248 = vperm.slane %v247, 0
    %249 = vmatpush.msra.mxu0 %v246
    %250 = vmatpush.msra.mxu0 %v245
    %251 = vmatpush.msra.mxu0 %v244
    %252 = vmatpush.msra.mxu0 %v243
    %253 = vmatpush.msra.mxu0 %v242
    %254 = vmatpush.msra.mxu0 %v241
    %255 = vmatpush.msra.mxu0 %v240
    %256 = vmatpush.msra.mxu0 %v239
    %257 = vmatpush.msra.mxu0 %v238
    %258 = vmatpush.msra.mxu0 %v237
    %259 = vmatpush.msra.mxu0 %v236
    %260 = vmatpush.msra.mxu0 %v235
    %261 = vmatpush.msra.mxu0 %v234
    %262 = vmatpush.msra.mxu0 %v233
    %263 = vmatpush.msra.mxu0 %v232
    %264 = vmatpush.msra.mxu0 %v231
    %265 = vmatmul.f32.gmra.mxu0 %v230
    %v266 = vpop.f32.mrf.mxu0
    %v267 = vadd.f32 %v248, %v266
    %268 = vdwg.mxu0
    %v269 = vtanh.pop %v267
    %v270 = vld [vmem:[#allocation10] sm:$0xff]
    %v271 = vld [vmem:[#allocation10 + $0x8] sm:$0xff]
    %v272 = vld [vmem:[#allocation10 + $0x10] sm:$0xff]
    %v273 = vld [vmem:[#allocation10 + $0x18] sm:$0xff]
    %v274 = vld [vmem:[#allocation10 + $0x20] sm:$0xff]
    %v275 = vld [vmem:[#allocation10 + $0x28] sm:$0xff]
    %v276 = vld [vmem:[#allocation10 + $0x30] sm:$0xff]
    %v277 = vld [vmem:[#allocation10 + $0x38] sm:$0xff]
    %v278 = vld [vmem:[#allocation10 + $0x40] sm:$0xff]
    %v279 = vld [vmem:[#allocation10 + $0x48] sm:$0xff]
    %v280 = vld [vmem:[#allocation10 + $0x50] sm:$0xff]
    %v281 = vld [vmem:[#allocation10 + $0x58] sm:$0xff]
    %v282 = vld [vmem:[#allocation10 + $0x60] sm:$0xff]
    %v283 = vld [vmem:[#allocation10 + $0x68] sm:$0xff]
    %v284 = vld [vmem:[#allocation10 + $0x70] sm:$0xff]
    %v285 = vld [vmem:[#allocation10 + $0x78] sm:$0xff]
    %v286 = vld [vmem:[#allocation5 + $0x2] sm:$0x1]
    %v287 = vperm.slane %v286, 0
    %288 = vmatpush.msra.mxu0 %v285
    %289 = vmatpush.msra.mxu0 %v284
    %290 = vmatpush.msra.mxu0 %v283
    %291 = vmatpush.msra.mxu0 %v282
    %292 = vmatpush.msra.mxu0 %v281
    %293 = vmatpush.msra.mxu0 %v280
    %294 = vmatpush.msra.mxu0 %v279
    %295 = vmatpush.msra.mxu0 %v278
    %296 = vmatpush.msra.mxu0 %v277
    %297 = vmatpush.msra.mxu0 %v276
    %298 = vmatpush.msra.mxu0 %v275
    %299 = vmatpush.msra.mxu0 %v274
    %300 = vmatpush.msra.mxu0 %v273
    %301 = vmatpush.msra.mxu0 %v272
    %302 = vmatpush.msra.mxu0 %v271
    %303 = vmatpush.msra.mxu0 %v270
    %304 = vmatmul.f32.gmra.mxu0 %v269
    %v305 = vpop.f32.mrf.mxu0
    %v306 = vadd.f32 %v287, %v305
    %307 = vdwg.mxu0
    %v308 = vld [vmem:[#allocation11] sm:$0xff]
    %v309 = vld [vmem:[#allocation11 + $0x8] sm:$0xff]
    %v310 = vld [vmem:[#allocation11 + $0x10] sm:$0xff]
    %v311 = vld [vmem:[#allocation11 + $0x18] sm:$0xff]
    %v312 = vld [vmem:[#allocation11 + $0x20] sm:$0xff]
    %v313 = vld [vmem:[#allocation11 + $0x28] sm:$0xff]
    %v314 = vld [vmem:[#allocation11 + $0x30] sm:$0xff]
    %v315 = vld [vmem:[#allocation11 + $0x38] sm:$0xff]
    %v316 = vld [vmem:[#allocation11 + $0x40] sm:$0xff]
    %v317 = vld [vmem:[#allocation11 + $0x48] sm:$0xff]
    %v318 = vld [vmem:[#allocation11 + $0x50] sm:$0xff]
    %v319 = vld [vmem:[#allocation11 + $0x58] sm:$0xff]
    %v320 = vld [vmem:[#allocation11 + $0x60] sm:$0xff]
    %v321 = vld [vmem:[#allocation11 + $0x68] sm:$0xff]
    %v322 = vld [vmem:[#allocation11 + $0x70] sm:$0xff]
    %v323 = vld [vmem:[#allocation11 + $0x78] sm:$0xff]
    %v324 = vld [vmem:[#allocation5 + $0x3] sm:$0x1]
    %v325 = vperm.slane %v324, 0
    %326 = vmatpush.msra.mxu0 %v323
    %327 = vmatpush.msra.mxu0 %v322
    %328 = vmatpush.msra.mxu0 %v321
    %329 = vmatpush.msra.mxu0 %v320
    %330 = vmatpush.msra.mxu0 %v319
    %331 = vmatpush.msra.mxu0 %v318
    %332 = vmatpush.msra.mxu0 %v317
    %333 = vmatpush.msra.mxu0 %v316
    %334 = vmatpush.msra.mxu0 %v315
    %335 = vmatpush.msra.mxu0 %v314
    %336 = vmatpush.msra.mxu0 %v313
    %337 = vmatpush.msra.mxu0 %v312
    %338 = vmatpush.msra.mxu0 %v311
    %339 = vmatpush.msra.mxu0 %v310
    %340 = vmatpush.msra.mxu0 %v309
    %341 = vmatpush.msra.mxu0 %v308
    %342 = vmatmul.f32.gmra.mxu0 %v306
    %v343 = vpop.f32.mrf.mxu0
    %v344 = vadd.f32 %v325, %v343
    %345 = vdwg.mxu0
    %346 = vst [vmem:[#allocation19] sm:$0xff] %v344
    %v347 = vld [vmem:[#allocation13] sm:$0xff]
    %v348 = vld [vmem:[#allocation13 + $0x8] sm:$0xff]
    %v349 = vld [vmem:[#allocation13 + $0x10] sm:$0xff]
    %v350 = vld [vmem:[#allocation13 + $0x18] sm:$0xff]
    %v351 = vld [vmem:[#allocation13 + $0x20] sm:$0xff]
    %v352 = vld [vmem:[#allocation13 + $0x28] sm:$0xff]
    %v353 = vld [vmem:[#allocation13 + $0x30] sm:$0xff]
    %v354 = vld [vmem:[#allocation13 + $0x38] sm:$0xff]
    %v355 = vld [vmem:[#allocation13 + $0x40] sm:$0xff]
    %v356 = vld [vmem:[#allocation13 + $0x48] sm:$0xff]
    %v357 = vld [vmem:[#allocation13 + $0x50] sm:$0xff]
    %v358 = vld [vmem:[#allocation13 + $0x58] sm:$0xff]
    %v359 = vld [vmem:[#allocation13 + $0x60] sm:$0xff]
    %v360 = vld [vmem:[#allocation13 + $0x68] sm:$0xff]
    %v361 = vld [vmem:[#allocation13 + $0x70] sm:$0xff]
    %v362 = vld [vmem:[#allocation13 + $0x78] sm:$0xff]
    %v363 = vld [vmem:[#allocation5 + $0x4] sm:$0x1]
    %v364 = vperm.slane %v363, 0
    %365 = vmatpush.msra.mxu0 %v362
    %366 = vmatpush.msra.mxu0 %v361
    %367 = vmatpush.msra.mxu0 %v360
    %368 = vmatpush.msra.mxu0 %v359
    %369 = vmatpush.msra.mxu0 %v358
    %370 = vmatpush.msra.mxu0 %v357
    %371 = vmatpush.msra.mxu0 %v356
    %372 = vmatpush.msra.mxu0 %v355
    %373 = vmatpush.msra.mxu0 %v354
    %374 = vmatpush.msra.mxu0 %v353
    %375 = vmatpush.msra.mxu0 %v352
    %376 = vmatpush.msra.mxu0 %v351
    %377 = vmatpush.msra.mxu0 %v350
    %378 = vmatpush.msra.mxu0 %v349
    %379 = vmatpush.msra.mxu0 %v348
    %380 = vmatpush.msra.mxu0 %v347
    %381 = vmatmul.f32.gmra.mxu0 %v344
    %v382 = vpop.f32.mrf.mxu0
    %v383 = vadd.f32 %v364, %v382
    %384 = vdwg.mxu0
    %v385 = vtanh.pop %v383
    %v386 = vld [vmem:[#allocation14] sm:$0xff]
    %v387 = vld [vmem:[#allocation14 + $0x8] sm:$0xff]
    %v388 = vld [vmem:[#allocation14 + $0x10] sm:$0xff]
    %v389 = vld [vmem:[#allocation14 + $0x18] sm:$0xff]
    %v390 = vld [vmem:[#allocation14 + $0x20] sm:$0xff]
    %v391 = vld [vmem:[#allocation14 + $0x28] sm:$0xff]
    %v392 = vld [vmem:[#allocation14 + $0x30] sm:$0xff]
    %v393 = vld [vmem:[#allocation14 + $0x38] sm:$0xff]
    %v394 = vld [vmem:[#allocation14 + $0x40] sm:$0xff]
    %v395 = vld [vmem:[#allocation14 + $0x48] sm:$0xff]
    %v396 = vld [vmem:[#allocation14 + $0x50] sm:$0xff]
    %v397 = vld [vmem:[#allocation14 + $0x58] sm:$0xff]
    %v398 = vld [vmem:[#allocation14 + $0x60] sm:$0xff]
    %v399 = vld [vmem:[#allocation14 + $0x68] sm:$0xff]
    %v400 = vld [vmem:[#allocation14 + $0x70] sm:$0xff]
    %v401 = vld [vmem:[#allocation14 + $0x78] sm:$0xff]
    %v402 = vld [vmem:[#allocation5 + $0x5] sm:$0x1]
    %v403 = vperm.slane %v402, 0
    %404 = vmatpush.msra.mxu0 %v401
    %405 = vmatpush.msra.mxu0 %v400
    %406 = vmatpush.msra.mxu0 %v399
    %407 = vmatpush.msra.mxu0 %v398
    %408 = vmatpush.msra.mxu0 %v397
    %409 = vmatpush.msra.mxu0 %v396
    %410 = vmatpush.msra.mxu0 %v395
    %411 = vmatpush.msra.mxu0 %v394
    %412 = vmatpush.msra.mxu0 %v393
    %413 = vmatpush.msra.mxu0 %v392
    %414 = vmatpush.msra.mxu0 %v391
    %415 = vmatpush.msra.mxu0 %v390
    %416 = vmatpush.msra.mxu0 %v389
    %417 = vmatpush.msra.mxu0 %v388
    %418 = vmatpush.msra.mxu0 %v387
    %419 = vmatpush.msra.mxu0 %v386
    %420 = vmatmul.f32.gmra.mxu0 %v385
    %v421 = vpop.f32.mrf.mxu0
    %v422 = vadd.f32 %v403, %v421
    %423 = vdwg.mxu0
    %v424 = vtanh.pop %v422
    %v425 = vld [vmem:[#allocation16] sm:$0xff]
    %v426 = vld [vmem:[#allocation16 + $0x8] sm:$0xff]
    %v427 = vld [vmem:[#allocation16 + $0x10] sm:$0xff]
    %v428 = vld [vmem:[#allocation16 + $0x18] sm:$0xff]
    %v429 = vld [vmem:[#allocation16 + $0x20] sm:$0xff]
    %v430 = vld [vmem:[#allocation16 + $0x28] sm:$0xff]
    %v431 = vld [vmem:[#allocation16 + $0x30] sm:$0xff]
    %v432 = vld [vmem:[#allocation16 + $0x38] sm:$0xff]
    %v433 = vld [vmem:[#allocation16 + $0x40] sm:$0xff]
    %v434 = vld [vmem:[#allocation16 + $0x48] sm:$0xff]
    %v435 = vld [vmem:[#allocation16 + $0x50] sm:$0xff]
    %v436 = vld [vmem:[#allocation16 + $0x58] sm:$0xff]
    %v437 = vld [vmem:[#allocation16 + $0x60] sm:$0xff]
    %v438 = vld [vmem:[#allocation16 + $0x68] sm:$0xff]
    %v439 = vld [vmem:[#allocation16 + $0x70] sm:$0xff]
    %v440 = vld [vmem:[#allocation16 + $0x78] sm:$0xff]
    %v441 = vld [vmem:[#allocation5 + $0x6] sm:$0x1]
    %v442 = vperm.slane %v441, 0
    %443 = vmatpush.msra.mxu0 %v440
    %444 = vmatpush.msra.mxu0 %v439
    %445 = vmatpush.msra.mxu0 %v438
    %446 = vmatpush.msra.mxu0 %v437
    %447 = vmatpush.msra.mxu0 %v436
    %448 = vmatpush.msra.mxu0 %v435
    %449 = vmatpush.msra.mxu0 %v434
    %450 = vmatpush.msra.mxu0 %v433
    %451 = vmatpush.msra.mxu0 %v432
    %452 = vmatpush.msra.mxu0 %v431
    %453 = vmatpush.msra.mxu0 %v430
    %454 = vmatpush.msra.mxu0 %v429
    %455 = vmatpush.msra.mxu0 %v428
    %456 = vmatpush.msra.mxu0 %v427
    %457 = vmatpush.msra.mxu0 %v426
    %458 = vmatpush.msra.mxu0 %v425
    %459 = vmatmul.f32.gmra.mxu0 %v424
    %v460 = vpop.f32.mrf.mxu0
    %v461 = vadd.f32 %v442, %v460
    %462 = vdwg.mxu0
    %v463 = vld [vmem:[#allocation17] sm:$0xff]
    %v464 = vld [vmem:[#allocation17 + $0x8] sm:$0xff]
    %v465 = vld [vmem:[#allocation17 + $0x10] sm:$0xff]
    %v466 = vld [vmem:[#allocation17 + $0x18] sm:$0xff]
    %v467 = vld [vmem:[#allocation17 + $0x20] sm:$0xff]
    %v468 = vld [vmem:[#allocation17 + $0x28] sm:$0xff]
    %v469 = vld [vmem:[#allocation17 + $0x30] sm:$0xff]
    %v470 = vld [vmem:[#allocation17 + $0x38] sm:$0xff]
    %v471 = vld [vmem:[#allocation17 + $0x40] sm:$0xff]
    %v472 = vld [vmem:[#allocation17 + $0x48] sm:$0xff]
    %v473 = vld [vmem:[#allocation17 + $0x50] sm:$0xff]
    %v474 = vld [vmem:[#allocation17 + $0x58] sm:$0xff]
    %v475 = vld [vmem:[#allocation17 + $0x60] sm:$0xff]
    %v476 = vld [vmem:[#allocation17 + $0x68] sm:$0xff]
    %v477 = vld [vmem:[#allocation17 + $0x70] sm:$0xff]
    %v478 = vld [vmem:[#allocation17 + $0x78] sm:$0xff]
    %v479 = vld [vmem:[#allocation5 + $0x7] sm:$0x1]
    %v480 = vperm.slane %v479, 0
    %481 = vmatpush.msra.mxu0 %v478
    %482 = vmatpush.msra.mxu0 %v477
    %483 = vmatpush.msra.mxu0 %v476
    %484 = vmatpush.msra.mxu0 %v475
    %485 = vmatpush.msra.mxu0 %v474
    %486 = vmatpush.msra.mxu0 %v473
    %487 = vmatpush.msra.mxu0 %v472
    %488 = vmatpush.msra.mxu0 %v471
    %489 = vmatpush.msra.mxu0 %v470
    %490 = vmatpush.msra.mxu0 %v469
    %491 = vmatpush.msra.mxu0 %v468
    %492 = vmatpush.msra.mxu0 %v467
    %493 = vmatpush.msra.mxu0 %v466
    %494 = vmatpush.msra.mxu0 %v465
    %495 = vmatpush.msra.mxu0 %v464
    %496 = vmatpush.msra.mxu0 %v463
    %497 = vmatmul.f32.gmra.mxu0 %v461
    %v498 = vpop.f32.mrf.mxu0
    %v499 = vadd.f32 %v480, %v498
    %500 = vdwg.mxu0
    %501 = vst [vmem:[#allocation20] sm:$0xff] %v499
    // Predicated region
    $region82: #{tpu_custom_call.1} parent=1 // pred_check
      _
    $region83: #{tpu_custom_call.1} parent=1 // pred_check_branch
      %503 = sbr.rel (0) target = $region85
    $region84: #{tpu_custom_call.1} parent=1 // pred_region
      %505 = vsyncadd [#allocation4], 0
      %s507 = sshll.u32 [#allocation19], 4
      %s508 = int_to_ptr.vmem [resolvable:$true] %s507
      %s509 = sshll.u32 %s10, 4
      %s510 = int_to_ptr.hbm [resolvable:$true] %s509
      %512 = dma.vmem_to_hbm [thread:$0]  %s508, 128, %s510, [#allocation4]
    $region85: #{tpu_custom_call.1} parent=1 // pred_fallthru
      _
    // Predicated region
    $region86: #{tpu_custom_call.1} parent=1 // pred_check
      _
    $region87: #{tpu_custom_call.1} parent=1 // pred_check_branch
      %514 = sbr.rel (0) target = $region89
    $region88: #{tpu_custom_call.1} parent=1 // pred_region
      %516 = vsyncadd [#allocation21], 0
      %s518 = sshll.u32 [#allocation20], 4
      %s519 = int_to_ptr.vmem [resolvable:$true] %s518
      %s520 = sshll.u32 %s11, 4
      %s521 = int_to_ptr.hbm [resolvable:$true] %s520
      %523 = dma.vmem_to_hbm [thread:$0]  %s519, 128, %s521, [#allocation21]
    $region89: #{tpu_custom_call.1} parent=1 // pred_fallthru
      _
    // Predicated region
    $region90: #{tpu_custom_call.1} parent=1 // pred_check
      _
    $region91: #{tpu_custom_call.1} parent=1 // pred_check_branch
      %525 = sbr.rel (0) target = $region93
    $region92: #{tpu_custom_call.1} parent=1 // pred_region
      %527 = dma.done [#allocation4], 128
    $region93: #{tpu_custom_call.1} parent=1 // pred_fallthru
      _
    // Predicated region
    $region94: #{tpu_custom_call.1} parent=1 // pred_check
      _
    $region95: #{tpu_custom_call.1} parent=1 // pred_check_branch
      %529 = sbr.rel (0) target = $region97
    $region96: #{tpu_custom_call.1} parent=1 // pred_region
      %531 = dma.done [#allocation21], 128
    $region97: #{tpu_custom_call.1} parent=1 // pred_fallthru
      _
    %532 = vsyncpa [#allocation3], 1
    %533 = vsyncpa [#allocation6], 1
    %534 = vsyncpa [#allocation9], 1
    %535 = vsyncpa [#allocation12], 1
    %536 = vsyncpa [#allocation15], 1
    %537 = vsyncpa [#allocation18], 1
    %538 = vsyncpa [#allocation4], 1
    %539 = vsyncpa [#allocation21], 1

</llo_original>
